<compile_context>
chip_gen: v7x
topology: tpu7x:2x2x1
jax: 0.10.0
libtpu: 0.0.40
codegen_flags: <defaults>
</compile_context>

<pallas_src>
import functools

import jax
import jax.numpy as jnp
from jax import lax
from jax.experimental import pallas as pl
from jax.experimental.pallas import tpu as pltpu


# ---------------------------------------------------------------------------
# Fused kernel: projections + attention + head-merge + fc + residual + LayerNorm
# ---------------------------------------------------------------------------

def _mha_fused_kernel(q_ref, k_ref, v_ref,
                      wq_ref, wk_ref, wv_ref,
                      wfc_ref, bfc_ref, gamma_ref, beta_ref,
                      o_ref, *, n_head, d_k, d_v, temperature, eps):
    # q/k/v blocks: (1, len, d_model) f32 ; weights: bf16, already (d_in, d_out).
    x_q = q_ref[0]                       # (len_q, d_model), also the residual
    x_k = k_ref[0]
    x_v = v_ref[0]
    len_q, d_model = x_q.shape

    # --- fused Q/K/V projections: bf16 MXU operands, f32 accumulation -------------
    q_proj = jnp.dot(x_q.astype(jnp.bfloat16), wq_ref[...],
                     preferred_element_type=jnp.float32)   # (len_q, n_head*d_k)
    k_proj = jnp.dot(x_k.astype(jnp.bfloat16), wk_ref[...],
                     preferred_element_type=jnp.float32)   # (len_k, n_head*d_k)
    v_proj = jnp.dot(x_v.astype(jnp.bfloat16), wv_ref[...],
                     preferred_element_type=jnp.float32)   # (len_v, n_head*d_v)

    w_fc = wfc_ref[...]                  # (n_head*d_v, d_model) bf16
    inv_temp = 1.0 / temperature

    # --- per-head attention, head-merge fused with fc via accumulation ------------
    acc = jnp.zeros((len_q, d_model), jnp.float32)
    for h in range(n_head):              # n_head is static -> unrolled at trace time
        q_h = q_proj[:, h * d_k:(h + 1) * d_k]              # (len_q, d_k) f32
        k_h = k_proj[:, h * d_k:(h + 1) * d_k]              # (len_k, d_k) f32
        v_h = v_proj[:, h * d_v:(h + 1) * d_v]              # (len_k, d_v) f32

        # S = (Q_h @ K_h^T) / temperature, contracting last dims (no transpose).
        s = lax.dot_general(q_h.astype(jnp.bfloat16), k_h.astype(jnp.bfloat16),
                            dimension_numbers=(((1,), (1,)), ((), ())),
                            preferred_element_type=jnp.float32) * inv_temp

        # softmax(dim=2) in f32; divide moved to the EUP via approx reciprocal.
        m = jnp.max(s, axis=-1, keepdims=True)
        e = jnp.exp(s - m)
        denom = jnp.sum(e, axis=-1, keepdims=True)
        p = e * pl.reciprocal(denom, approx=True)           # attn probs (dropout = id)

        # O_h = P @ V_h ; then fold head-merge + fc: acc += O_h @ W_fc[h*d_v:(h+1)*d_v]
        o_h = jnp.dot(p.astype(jnp.bfloat16), v_h.astype(jnp.bfloat16),
                      preferred_element_type=jnp.float32)   # (len_q, d_v)
        acc = acc + jnp.dot(o_h.astype(jnp.bfloat16),
                            w_fc[h * d_v:(h + 1) * d_v, :],
                            preferred_element_type=jnp.float32)

    # --- fc bias + residual + LayerNorm (all f32) ---------------------------------
    y = acc + bfc_ref[...] + x_q
    mean = jnp.mean(y, axis=-1, keepdims=True)
    var = jnp.mean(jnp.square(y - mean), axis=-1, keepdims=True)
    y_hat = (y - mean) * lax.rsqrt(var + eps)
    o_ref[0] = (y_hat * gamma_ref[...] + beta_ref[...]).astype(o_ref.dtype)


# ---------------------------------------------------------------------------
# Wrapper
# ---------------------------------------------------------------------------

def multi_head_attention_forward(q, k, v, params, *, n_head, d_k, d_v):
    """Reproduces MultiHeadAttention.forward (eval mode, dropout = identity)."""
    sz_b, len_q, d_model = q.shape
    _, len_k, _ = k.shape
    _, len_v, _ = v.shape

    kernel = functools.partial(
        _mha_fused_kernel, n_head=n_head, d_k=d_k, d_v=d_v,
        temperature=float(d_k) ** 0.5, eps=1e-5)

    const = lambda b: (0, 0)   # weights / bias / gamma / beta stay resident in VMEM

    return pl.pallas_call(
        kernel,
        out_shape=jax.ShapeDtypeStruct((sz_b, len_q, d_model), jnp.float32),
        grid_spec=pltpu.PrefetchScalarGridSpec(
            num_scalar_prefetch=0,
            grid=(sz_b,),
            in_specs=[
                pl.BlockSpec((1, len_q, d_model), lambda b: (b, 0, 0)),
                pl.BlockSpec((1, len_k, d_model), lambda b: (b, 0, 0)),
                pl.BlockSpec((1, len_v, d_model), lambda b: (b, 0, 0)),
                pl.BlockSpec((d_model, n_head * d_k), const),
                pl.BlockSpec((d_model, n_head * d_k), const),
                pl.BlockSpec((d_model, n_head * d_v), const),
                pl.BlockSpec((n_head * d_v, d_model), const),
                pl.BlockSpec((1, d_model), const),
                pl.BlockSpec((1, d_model), const),
                pl.BlockSpec((1, d_model), const),
            ],
            out_specs=pl.BlockSpec((1, len_q, d_model), lambda b: (b, 0, 0)),
        ),
        compiler_params=pltpu.CompilerParams(
            dimension_semantics=("parallel",),
            vmem_limit_bytes=32 * 1024 * 1024,
        ),
    )(q, k, v,
      params["w_qs"], params["w_ks"], params["w_vs"],
      params["fc_w"], params["fc_b"], params["ln_gamma"], params["ln_beta"])


# ---------------------------------------------------------------------------
# Deterministic parameter init (mirrors the module's __init__ statistics).
# Weights are stored already transposed to (d_in, d_out) and pre-cast to bf16
# (hoisted out of the forward pass, per review).
# ---------------------------------------------------------------------------

def init_params(key, n_head, d_model, d_k, d_v):
    ks = jax.random.split(key, 5)
    std_qk = (2.0 / (d_model + d_k)) ** 0.5
    std_v = (2.0 / (d_model + d_v)) ** 0.5
    std_fc = (2.0 / (n_head * d_v + d_model)) ** 0.5        # xavier_normal
    bound_fc = 1.0 / (n_head * d_v) ** 0.5                  # default Linear bias init
    f32, bf16 = jnp.float32, jnp.bfloat16
    return {
        "w_qs": (std_qk * jax.random.normal(ks[0], (d_model, n_head * d_k), f32)).astype(bf16),
        "w_ks": (std_qk * jax.random.normal(ks[1], (d_model, n_head * d_k), f32)).astype(bf16),
        "w_vs": (std_v * jax.random.normal(ks[2], (d_model, n_head * d_v), f32)).astype(bf16),
        "fc_w": (std_fc * jax.random.normal(ks[3], (n_head * d_v, d_model), f32)).astype(bf16),
        "fc_b": bound_fc * jax.random.uniform(ks[4], (1, d_model), f32, minval=-1.0, maxval=1.0),
        "ln_gamma": jnp.ones((1, d_model), f32),
        "ln_beta": jnp.zeros((1, d_model), f32),
    }


# ---------------------------------------------------------------------------
# Main
# ---------------------------------------------------------------------------

if __name__ == "__main__":
    n_head, d_model, d_k, d_v = 2, 32, 16, 16
    sz_b, seq_len = 2, 8

    key = jax.random.PRNGKey(0)
    k_params, k_q, k_k, k_v = jax.random.split(key, 4)

    params = init_params(k_params, n_head, d_model, d_k, d_v)
    q = jax.random.normal(k_q, (sz_b, seq_len, d_model), jnp.float32)
    k = jax.random.normal(k_k, (sz_b, seq_len, d_model), jnp.float32)
    v = jax.random.normal(k_v, (sz_b, seq_len, d_model), jnp.float32)

    out = multi_head_attention_forward(q, k, v, params,
                                       n_head=n_head, d_k=d_k, d_v=d_v)
    out = jax.block_until_ready(out)
    assert out.shape == (sz_b, seq_len, d_model)
    assert bool(jnp.all(jnp.isfinite(out)))
    print("KERNEL_OK")
</pallas_src>

<mosaic_0001>
module attributes {stable_mosaic.version = 11 : i64} {
  func.func @_mha_fused_kernel(%arg0: i32, %arg1: memref<1x8x32xf32, #tpu.memory_space<vmem>>, %arg2: memref<1x8x32xf32, #tpu.memory_space<vmem>>, %arg3: memref<1x8x32xf32, #tpu.memory_space<vmem>>, %arg4: memref<32x32xbf16, #tpu.memory_space<vmem>>, %arg5: memref<32x32xbf16, #tpu.memory_space<vmem>>, %arg6: memref<32x32xbf16, #tpu.memory_space<vmem>>, %arg7: memref<32x32xbf16, #tpu.memory_space<vmem>>, %arg8: memref<1x32xf32, #tpu.memory_space<vmem>>, %arg9: memref<1x32xf32, #tpu.memory_space<vmem>>, %arg10: memref<1x32xf32, #tpu.memory_space<vmem>>, %arg11: memref<1x8x32xf32, #tpu.memory_space<vmem>>) attributes {dimension_semantics = [#tpu.dimension_semantics<parallel>], iteration_bounds = array<i64: 2>, scalar_prefetch = 0 : i64, scratch_operands = 0 : i64, tpu.core_type = #tpu.core_type<tc>, window_params = [{transform_indices = @transform_0, window_bounds = array<i64: 1, 8, 32>}, {transform_indices = @transform_1, window_bounds = array<i64: 1, 8, 32>}, {transform_indices = @transform_2, window_bounds = array<i64: 1, 8, 32>}, {pipeline_mode = #tpu.pipeline_mode<synchronous>, transform_indices = @transform_3, window_bounds = array<i64: 32, 32>}, {pipeline_mode = #tpu.pipeline_mode<synchronous>, transform_indices = @transform_4, window_bounds = array<i64: 32, 32>}, {pipeline_mode = #tpu.pipeline_mode<synchronous>, transform_indices = @transform_5, window_bounds = array<i64: 32, 32>}, {pipeline_mode = #tpu.pipeline_mode<synchronous>, transform_indices = @transform_6, window_bounds = array<i64: 32, 32>}, {pipeline_mode = #tpu.pipeline_mode<synchronous>, transform_indices = @transform_7, window_bounds = array<i64: 1, 32>}, {pipeline_mode = #tpu.pipeline_mode<synchronous>, transform_indices = @transform_8, window_bounds = array<i64: 1, 32>}, {pipeline_mode = #tpu.pipeline_mode<synchronous>, transform_indices = @transform_9, window_bounds = array<i64: 1, 32>}, {transform_indices = @transform_10, window_bounds = array<i64: 1, 8, 32>}]} {
    %c0 = arith.constant 0 : index
    %c0_0 = arith.constant 0 : index
    %c0_1 = arith.constant 0 : index
    %0 = vector.load %arg1[%c0, %c0_0, %c0_1] : memref<1x8x32xf32, #tpu.memory_space<vmem>>, vector<1x8x32xf32>
    %1 = vector.shape_cast %0 : vector<1x8x32xf32> to vector<8x32xf32>
    %c0_2 = arith.constant 0 : index
    %c0_3 = arith.constant 0 : index
    %c0_4 = arith.constant 0 : index
    %2 = vector.load %arg2[%c0_2, %c0_3, %c0_4] : memref<1x8x32xf32, #tpu.memory_space<vmem>>, vector<1x8x32xf32>
    %3 = vector.shape_cast %2 : vector<1x8x32xf32> to vector<8x32xf32>
    %c0_5 = arith.constant 0 : index
    %c0_6 = arith.constant 0 : index
    %c0_7 = arith.constant 0 : index
    %4 = vector.load %arg3[%c0_5, %c0_6, %c0_7] : memref<1x8x32xf32, #tpu.memory_space<vmem>>, vector<1x8x32xf32>
    %5 = vector.shape_cast %4 : vector<1x8x32xf32> to vector<8x32xf32>
    %6 = arith.truncf %1 : vector<8x32xf32> to vector<8x32xbf16>
    %c0_8 = arith.constant 0 : index
    %c0_9 = arith.constant 0 : index
    %7 = vector.load %arg4[%c0_8, %c0_9] : memref<32x32xbf16, #tpu.memory_space<vmem>>, vector<32x32xbf16>
    %cst = arith.constant dense<0.000000e+00> : vector<8x32xf32>
    %8 = tpu.matmul %6, %7, %cst {dimension_numbers = #tpu.dot_dimension_numbers<[1], [0], [0], [1], [0, 0, 1, 1], [], []>} : vector<8x32xbf16>, vector<32x32xbf16>, vector<8x32xf32> -> vector<8x32xf32>
    %9 = arith.truncf %3 : vector<8x32xf32> to vector<8x32xbf16>
    %c0_10 = arith.constant 0 : index
    %c0_11 = arith.constant 0 : index
    %10 = vector.load %arg5[%c0_10, %c0_11] : memref<32x32xbf16, #tpu.memory_space<vmem>>, vector<32x32xbf16>
    %cst_12 = arith.constant dense<0.000000e+00> : vector<8x32xf32>
    %11 = tpu.matmul %9, %10, %cst_12 {dimension_numbers = #tpu.dot_dimension_numbers<[1], [0], [0], [1], [0, 0, 1, 1], [], []>} : vector<8x32xbf16>, vector<32x32xbf16>, vector<8x32xf32> -> vector<8x32xf32>
    %12 = arith.truncf %5 : vector<8x32xf32> to vector<8x32xbf16>
    %c0_13 = arith.constant 0 : index
    %c0_14 = arith.constant 0 : index
    %13 = vector.load %arg6[%c0_13, %c0_14] : memref<32x32xbf16, #tpu.memory_space<vmem>>, vector<32x32xbf16>
    %cst_15 = arith.constant dense<0.000000e+00> : vector<8x32xf32>
    %14 = tpu.matmul %12, %13, %cst_15 {dimension_numbers = #tpu.dot_dimension_numbers<[1], [0], [0], [1], [0, 0, 1, 1], [], []>} : vector<8x32xbf16>, vector<32x32xbf16>, vector<8x32xf32> -> vector<8x32xf32>
    %c0_16 = arith.constant 0 : index
    %c0_17 = arith.constant 0 : index
    %15 = vector.load %arg7[%c0_16, %c0_17] : memref<32x32xbf16, #tpu.memory_space<vmem>>, vector<32x32xbf16>
    %cst_18 = arith.constant 0.000000e+00 : f32
    %16 = vector.broadcast %cst_18 : f32 to vector<8x32xf32>
    %17 = vector.extract_strided_slice %8 {offsets = [0, 0], sizes = [8, 16], strides = [1, 1]} : vector<8x32xf32> to vector<8x16xf32>
    %18 = vector.extract_strided_slice %11 {offsets = [0, 0], sizes = [8, 16], strides = [1, 1]} : vector<8x32xf32> to vector<8x16xf32>
    %19 = vector.extract_strided_slice %14 {offsets = [0, 0], sizes = [8, 16], strides = [1, 1]} : vector<8x32xf32> to vector<8x16xf32>
    %20 = arith.truncf %17 : vector<8x16xf32> to vector<8x16xbf16>
    %21 = arith.truncf %18 : vector<8x16xf32> to vector<8x16xbf16>
    %cst_19 = arith.constant dense<0.000000e+00> : vector<8x8xf32>
    %22 = tpu.matmul %20, %21, %cst_19 {dimension_numbers = #tpu.dot_dimension_numbers<[1], [1], [0], [0], [0, 0, 1, 0], [], []>} : vector<8x16xbf16>, vector<8x16xbf16>, vector<8x8xf32> -> vector<8x8xf32>
    %cst_20 = arith.constant 2.500000e-01 : f32
    %23 = vector.broadcast %cst_20 : f32 to vector<8x8xf32>
    %24 = arith.mulf %22, %23 : vector<8x8xf32>
    %cst_21 = arith.constant dense<0xFF800000> : vector<8xf32>
    %25 = vector.multi_reduction <maximumf>, %24, %cst_21 [1] : vector<8x8xf32> to vector<8xf32>
    %26 = vector.shape_cast %25 : vector<8xf32> to vector<8x1xf32>
    %27 = vector.broadcast %26 : vector<8x1xf32> to vector<8x8xf32>
    %28 = arith.subf %24, %27 : vector<8x8xf32>
    %29 = math.exp %28 : vector<8x8xf32>
    %cst_22 = arith.constant dense<0.000000e+00> : vector<8xf32>
    %30 = vector.multi_reduction <add>, %29, %cst_22 [1] : vector<8x8xf32> to vector<8xf32>
    %31 = vector.shape_cast %30 : vector<8xf32> to vector<8x1xf32>
    %32 = tpu.reciprocal %31 {approx = true} : vector<8x1xf32> -> vector<8x1xf32>
    %33 = vector.broadcast %32 : vector<8x1xf32> to vector<8x8xf32>
    %34 = arith.mulf %29, %33 : vector<8x8xf32>
    %35 = arith.truncf %34 : vector<8x8xf32> to vector<8x8xbf16>
    %36 = arith.truncf %19 : vector<8x16xf32> to vector<8x16xbf16>
    %cst_23 = arith.constant dense<0.000000e+00> : vector<8x16xf32>
    %37 = tpu.matmul %35, %36, %cst_23 {dimension_numbers = #tpu.dot_dimension_numbers<[1], [0], [0], [1], [0, 0, 1, 1], [], []>} : vector<8x8xbf16>, vector<8x16xbf16>, vector<8x16xf32> -> vector<8x16xf32>
    %38 = arith.truncf %37 : vector<8x16xf32> to vector<8x16xbf16>
    %39 = vector.extract_strided_slice %15 {offsets = [0, 0], sizes = [16, 32], strides = [1, 1]} : vector<32x32xbf16> to vector<16x32xbf16>
    %cst_24 = arith.constant dense<0.000000e+00> : vector<8x32xf32>
    %40 = tpu.matmul %38, %39, %cst_24 {dimension_numbers = #tpu.dot_dimension_numbers<[1], [0], [0], [1], [0, 0, 1, 1], [], []>} : vector<8x16xbf16>, vector<16x32xbf16>, vector<8x32xf32> -> vector<8x32xf32>
    %41 = arith.addf %16, %40 : vector<8x32xf32>
    %42 = vector.extract_strided_slice %8 {offsets = [0, 16], sizes = [8, 16], strides = [1, 1]} : vector<8x32xf32> to vector<8x16xf32>
    %43 = vector.extract_strided_slice %11 {offsets = [0, 16], sizes = [8, 16], strides = [1, 1]} : vector<8x32xf32> to vector<8x16xf32>
    %44 = vector.extract_strided_slice %14 {offsets = [0, 16], sizes = [8, 16], strides = [1, 1]} : vector<8x32xf32> to vector<8x16xf32>
    %45 = arith.truncf %42 : vector<8x16xf32> to vector<8x16xbf16>
    %46 = arith.truncf %43 : vector<8x16xf32> to vector<8x16xbf16>
    %cst_25 = arith.constant dense<0.000000e+00> : vector<8x8xf32>
    %47 = tpu.matmul %45, %46, %cst_25 {dimension_numbers = #tpu.dot_dimension_numbers<[1], [1], [0], [0], [0, 0, 1, 0], [], []>} : vector<8x16xbf16>, vector<8x16xbf16>, vector<8x8xf32> -> vector<8x8xf32>
    %cst_26 = arith.constant 2.500000e-01 : f32
    %48 = vector.broadcast %cst_26 : f32 to vector<8x8xf32>
    %49 = arith.mulf %47, %48 : vector<8x8xf32>
    %cst_27 = arith.constant dense<0xFF800000> : vector<8xf32>
    %50 = vector.multi_reduction <maximumf>, %49, %cst_27 [1] : vector<8x8xf32> to vector<8xf32>
    %51 = vector.shape_cast %50 : vector<8xf32> to vector<8x1xf32>
    %52 = vector.broadcast %51 : vector<8x1xf32> to vector<8x8xf32>
    %53 = arith.subf %49, %52 : vector<8x8xf32>
    %54 = math.exp %53 : vector<8x8xf32>
    %cst_28 = arith.constant dense<0.000000e+00> : vector<8xf32>
    %55 = vector.multi_reduction <add>, %54, %cst_28 [1] : vector<8x8xf32> to vector<8xf32>
    %56 = vector.shape_cast %55 : vector<8xf32> to vector<8x1xf32>
    %57 = tpu.reciprocal %56 {approx = true} : vector<8x1xf32> -> vector<8x1xf32>
    %58 = vector.broadcast %57 : vector<8x1xf32> to vector<8x8xf32>
    %59 = arith.mulf %54, %58 : vector<8x8xf32>
    %60 = arith.truncf %59 : vector<8x8xf32> to vector<8x8xbf16>
    %61 = arith.truncf %44 : vector<8x16xf32> to vector<8x16xbf16>
    %cst_29 = arith.constant dense<0.000000e+00> : vector<8x16xf32>
    %62 = tpu.matmul %60, %61, %cst_29 {dimension_numbers = #tpu.dot_dimension_numbers<[1], [0], [0], [1], [0, 0, 1, 1], [], []>} : vector<8x8xbf16>, vector<8x16xbf16>, vector<8x16xf32> -> vector<8x16xf32>
    %63 = arith.truncf %62 : vector<8x16xf32> to vector<8x16xbf16>
    %64 = vector.extract_strided_slice %15 {offsets = [16, 0], sizes = [16, 32], strides = [1, 1]} : vector<32x32xbf16> to vector<16x32xbf16>
    %cst_30 = arith.constant dense<0.000000e+00> : vector<8x32xf32>
    %65 = tpu.matmul %63, %64, %cst_30 {dimension_numbers = #tpu.dot_dimension_numbers<[1], [0], [0], [1], [0, 0, 1, 1], [], []>} : vector<8x16xbf16>, vector<16x32xbf16>, vector<8x32xf32> -> vector<8x32xf32>
    %66 = arith.addf %41, %65 : vector<8x32xf32>
    %c0_31 = arith.constant 0 : index
    %c0_32 = arith.constant 0 : index
    %67 = vector.load %arg8[%c0_31, %c0_32] : memref<1x32xf32, #tpu.memory_space<vmem>>, vector<1x32xf32>
    %68 = vector.broadcast %67 : vector<1x32xf32> to vector<8x32xf32>
    %69 = arith.addf %66, %68 : vector<8x32xf32>
    %70 = arith.addf %69, %1 : vector<8x32xf32>
    %cst_33 = arith.constant dense<0.000000e+00> : vector<8xf32>
    %71 = vector.multi_reduction <add>, %70, %cst_33 [1] : vector<8x32xf32> to vector<8xf32>
    %72 = vector.shape_cast %71 : vector<8xf32> to vector<8x1xf32>
    %cst_34 = arith.constant 3.200000e+01 : f32
    %73 = vector.broadcast %cst_34 : f32 to vector<8x1xf32>
    %74 = arith.divf %72, %73 : vector<8x1xf32>
    %75 = vector.broadcast %74 : vector<8x1xf32> to vector<8x32xf32>
    %76 = arith.subf %70, %75 : vector<8x32xf32>
    %77 = arith.mulf %76, %76 : vector<8x32xf32>
    %cst_35 = arith.constant dense<0.000000e+00> : vector<8xf32>
    %78 = vector.multi_reduction <add>, %77, %cst_35 [1] : vector<8x32xf32> to vector<8xf32>
    %79 = vector.shape_cast %78 : vector<8xf32> to vector<8x1xf32>
    %cst_36 = arith.constant 3.200000e+01 : f32
    %80 = vector.broadcast %cst_36 : f32 to vector<8x1xf32>
    %81 = arith.divf %79, %80 : vector<8x1xf32>
    %82 = vector.broadcast %74 : vector<8x1xf32> to vector<8x32xf32>
    %83 = arith.subf %70, %82 : vector<8x32xf32>
    %cst_37 = arith.constant 9.99999974E-6 : f32
    %84 = vector.broadcast %cst_37 : f32 to vector<8x1xf32>
    %85 = arith.addf %81, %84 : vector<8x1xf32>
    %86 = math.rsqrt %85 : vector<8x1xf32>
    %87 = vector.broadcast %86 : vector<8x1xf32> to vector<8x32xf32>
    %88 = arith.mulf %83, %87 : vector<8x32xf32>
    %c0_38 = arith.constant 0 : index
    %c0_39 = arith.constant 0 : index
    %89 = vector.load %arg9[%c0_38, %c0_39] : memref<1x32xf32, #tpu.memory_space<vmem>>, vector<1x32xf32>
    %90 = vector.broadcast %89 : vector<1x32xf32> to vector<8x32xf32>
    %91 = arith.mulf %88, %90 : vector<8x32xf32>
    %c0_40 = arith.constant 0 : index
    %c0_41 = arith.constant 0 : index
    %92 = vector.load %arg10[%c0_40, %c0_41] : memref<1x32xf32, #tpu.memory_space<vmem>>, vector<1x32xf32>
    %93 = vector.broadcast %92 : vector<1x32xf32> to vector<8x32xf32>
    %94 = arith.addf %91, %93 : vector<8x32xf32>
    %c0_42 = arith.constant 0 : index
    %c0_43 = arith.constant 0 : index
    %c0_44 = arith.constant 0 : index
    %95 = vector.load %arg11[%c0_42, %c0_43, %c0_44] : memref<1x8x32xf32, #tpu.memory_space<vmem>>, vector<1x8x32xf32>
    %96 = vector.shape_cast %95 : vector<1x8x32xf32> to vector<8x32xf32>
    %97 = vector.shape_cast %94 : vector<8x32xf32> to vector<1x8x32xf32>
    tpu.vector_store %arg11[%c0_42, %c0_43, %c0_44], %97 {strides = array<i32>} : memref<1x8x32xf32, #tpu.memory_space<vmem>>, vector<1x8x32xf32>,
    return
  }
  func.func @transform_0(%arg0: i32) -> (i32, i32, i32) {
    %c0_i32 = arith.constant 0 : i32
    %c0_i32_0 = arith.constant 0 : i32
    %c0_i32_1 = arith.constant 0 : i32
    return %arg0, %c0_i32, %c0_i32_0 : i32, i32, i32
  }
  func.func @transform_1(%arg0: i32) -> (i32, i32, i32) {
    %c0_i32 = arith.constant 0 : i32
    %c0_i32_0 = arith.constant 0 : i32
    %c0_i32_1 = arith.constant 0 : i32
    return %arg0, %c0_i32, %c0_i32_0 : i32, i32, i32
  }
  func.func @transform_2(%arg0: i32) -> (i32, i32, i32) {
    %c0_i32 = arith.constant 0 : i32
    %c0_i32_0 = arith.constant 0 : i32
    %c0_i32_1 = arith.constant 0 : i32
    return %arg0, %c0_i32, %c0_i32_0 : i32, i32, i32
  }
  func.func @transform_3(%arg0: i32) -> (i32, i32) {
    %c0_i32 = arith.constant 0 : i32
    %c0_i32_0 = arith.constant 0 : i32
    %c0_i32_1 = arith.constant 0 : i32
    return %c0_i32, %c0_i32_0 : i32, i32
  }
  func.func @transform_4(%arg0: i32) -> (i32, i32) {
    %c0_i32 = arith.constant 0 : i32
    %c0_i32_0 = arith.constant 0 : i32
    %c0_i32_1 = arith.constant 0 : i32
    return %c0_i32, %c0_i32_0 : i32, i32
  }
  func.func @transform_5(%arg0: i32) -> (i32, i32) {
    %c0_i32 = arith.constant 0 : i32
    %c0_i32_0 = arith.constant 0 : i32
    %c0_i32_1 = arith.constant 0 : i32
    return %c0_i32, %c0_i32_0 : i32, i32
  }
  func.func @transform_6(%arg0: i32) -> (i32, i32) {
    %c0_i32 = arith.constant 0 : i32
    %c0_i32_0 = arith.constant 0 : i32
    %c0_i32_1 = arith.constant 0 : i32
    return %c0_i32, %c0_i32_0 : i32, i32
  }
  func.func @transform_7(%arg0: i32) -> (i32, i32) {
    %c0_i32 = arith.constant 0 : i32
    %c0_i32_0 = arith.constant 0 : i32
    %c0_i32_1 = arith.constant 0 : i32
    return %c0_i32, %c0_i32_0 : i32, i32
  }
  func.func @transform_8(%arg0: i32) -> (i32, i32) {
    %c0_i32 = arith.constant 0 : i32
    %c0_i32_0 = arith.constant 0 : i32
    %c0_i32_1 = arith.constant 0 : i32
    return %c0_i32, %c0_i32_0 : i32, i32
  }
  func.func @transform_9(%arg0: i32) -> (i32, i32) {
    %c0_i32 = arith.constant 0 : i32
    %c0_i32_0 = arith.constant 0 : i32
    %c0_i32_1 = arith.constant 0 : i32
    return %c0_i32, %c0_i32_0 : i32, i32
  }
  func.func @transform_10(%arg0: i32) -> (i32, i32, i32) {
    %c0_i32 = arith.constant 0 : i32
    %c0_i32_0 = arith.constant 0 : i32
    %c0_i32_1 = arith.constant 0 : i32
    return %arg0, %c0_i32, %c0_i32_0 : i32, i32, i32
  }
}

</mosaic_0001>

<llo_original>
// kernel: tpu_custom_call.1
$region0: #{tpu_custom_call.1}
  #allocation0 [shape = 'u32[]', space=smem, size = 0x4, offset = 0x4, fixed_abs, tag = 'smem constant byte address 0x4 - core index']
  #allocation1 [shape = 'u32[144,128]{1,0:T(1,128)}', space=vmem, size = 0x12000, scoped, tag = 'internal scratch']
  %s0 = inlined_call_operand.hbm [shape: f32[2,8,32], index: 0, kind: input, shape index: {}]
  %s1 = inlined_call_operand.hbm [shape: f32[2,8,32], index: 1, kind: input, shape index: {}]
  %s2 = inlined_call_operand.hbm [shape: f32[2,8,32], index: 2, kind: input, shape index: {}]
  %s3 = inlined_call_operand.hbm [shape: bf16[32,32], index: 3, kind: input, shape index: {}]
  %s4 = inlined_call_operand.hbm [shape: bf16[32,32], index: 4, kind: input, shape index: {}]
  %s5 = inlined_call_operand.vmem [shape: bf16[32,32], index: 5, kind: input, shape index: {}]
  %s6 = inlined_call_operand.hbm [shape: bf16[32,32], index: 6, kind: input, shape index: {}]
  %s7 = inlined_call_operand.vmem [shape: f32[1,32], index: 7, kind: input, shape index: {}]
  %s8 = inlined_call_operand.vmem [shape: f32[1,32], index: 8, kind: input, shape index: {}]
  %s9 = inlined_call_operand.vmem [shape: f32[1,32], index: 9, kind: input, shape index: {}]
  %s10 = inlined_call_operand.hbm [shape: f32[2,8,32], index: 10, kind: output, shape index: {}]
  %s11 = sld [smem:[#allocation0]]
  $region97: #{tpu_custom_call.1} parent=0
    _
  %s13 = ssub.s32 1, %s11
  %s14 = scalar_select 0, %s13, %s11
  $region1: #{tpu_custom_call.1} parent=0
    #allocation2 [shape = 'u8[8192]{0}', space=vmem, size = 0x2000, scoped, tag = 'input window, operand 0']
    #allocation3 [shape = 's32[2]{0}', space=sflag, size = 0x8, scoped, tag = 'scoped memory for tpu_custom_call.1']
    #allocation4 [shape = 's32[2]{0}', space=sflag, size = 0x8, scoped, tag = 'scoped memory for tpu_custom_call.1']
    #allocation5 [shape = 'u8[8192]{0}', space=vmem, size = 0x2000, scoped, tag = 'input window, operand 1']
    #allocation6 [shape = 's32[2]{0}', space=sflag, size = 0x8, scoped, tag = 'scoped memory for tpu_custom_call.1']
    #allocation7 [shape = 'u8[8192]{0}', space=vmem, size = 0x2000, scoped, tag = 'input window, operand 2']
    #allocation8 [shape = 'u8[8192]{0}', space=vmem, size = 0x2000, scoped, tag = 'input window, operand 3, single buffered']
    #allocation9 [shape = 's32[1]{0}', space=sflag, size = 0x4, scoped, tag = 'scoped memory for tpu_custom_call.1']
    #allocation10 [shape = 'u8[8192]{0}', space=vmem, size = 0x2000, scoped, tag = 'input window, operand 4, single buffered']
    #allocation11 [shape = 'u8[8192]{0}', space=vmem, size = 0x2000, scoped, tag = 'input window, operand 6, single buffered']
    #allocation12 [shape = 's32[1]{0}', space=sflag, size = 0x4, scoped, tag = 'scoped memory for tpu_custom_call.1']
    #allocation13 [shape = 'u8[8192]{0}', space=vmem, size = 0x2000, scoped, tag = 'output window, operand 0']
    %15 = vsyncpa [#allocation3], 0
    %s16 = scalar_lea.sflag [#allocation3], 1
    %17 = vsyncpa %s16, 0
    %18 = vsyncpa [#allocation6], 0
    %s19 = scalar_lea.sflag [#allocation6], 1
    %20 = vsyncpa %s19, 0
    %21 = vsyncpa [#allocation9], 0
    %22 = vsyncpa [#allocation12], 0
    %23 = vsyncpa [#allocation4], 0
    %s24 = scalar_lea.sflag [#allocation4], 1
    %25 = vsyncpa %s24, 0
    loop: start=0, step=1, limit=4
    $region2: #{tpu_custom_call.1} parent=1 // loop_pre_header
      _
    $region3: #{tpu_custom_call.1} parent=1 // loop_header
      %s27 = sphi 0, %s31
      %p28 = scmp.ge.s32.totalorder %s27, 4
      %s37 = sphi 0, %s39
      %s40 = sphi 0, %s37
      %s41 = sphi 0, %s40
      %s57 = sphi 0, %s41
      %s63 = sphi 0, %s65
      %s66 = sphi 0, %s63
      %s67 = sphi 0, %s66
      %s83 = sphi 0, %s67
      %s89 = sphi 0, %s91
      %s92 = sphi 0, %s89
      %s93 = sphi 0, %s92
      %s109 = sphi 0, %s93
      %s113 = sphi 0, %s113
      %s115 = sphi 0, %s113
      %s116 = sphi 0, %s115
      %s130 = sphi 0, %s116
      %s134 = sphi 0, %s134
      %s136 = sphi 0, %s134
      %s137 = sphi 0, %s136
      %s151 = sphi 0, %s137
      %s155 = sphi 0, %s155
      %s157 = sphi 0, %s155
      %s158 = sphi 0, %s157
      %s172 = sphi 0, %s158
      %s176 = sphi 0, %s176
      %s178 = sphi 0, %s176
      %s179 = sphi 0, %s178
      %s193 = sphi 0, %s179
      %s197 = sphi 0, %s197
      %s199 = sphi 0, %s197
      %s200 = sphi 0, %s199
      %s214 = sphi 0, %s200
      %s218 = sphi 0, %s218
      %s220 = sphi 0, %s218
      %s221 = sphi 0, %s220
      %s235 = sphi 0, %s221
      %s239 = sphi 0, %s239
      %s241 = sphi 0, %s239
      %s242 = sphi 0, %s241
      %s256 = sphi 0, %s242
      %s262 = sphi 0, %s264
      %s265 = sphi 0, %s262
      %s266 = sphi 0, %s265
      %s282 = sphi 0, %s266
    $region4: #{tpu_custom_call.1} parent=1 // loop_header_branch
      %30 = sbr.rel (%p28) target = $region8
    $region5: #{tpu_custom_call.1} parent=1 // loop_body
      %s32 = ssub.s32 %s27, 1
      %s33 = ssub.s32 %s27, 2
      %s34 = sadd.s32 %s27, 1
      %s35 = ssub.s32 %s27, %s34
      %p36 = scmp.eq.s32.totalorder %s35, 0
      %s38 = sadd.s32 %s37, 1
      %s39 = scalar_select %p36, %s37, %s38
      %p42 = pneg %p36
      %p43 = scmp.eq.s32.totalorder %s27, 1
      %p44 = por %p42, %p43
      %p45 = scmp.ne.s32.totalorder %s37, %s40
      %p46 = scmp.eq.s32.totalorder %s27, 0
      %p47 = por %p45, %p46
      %p48 = scmp.ne.s32.totalorder %s37, %s40
      %p49 = scmp.eq.s32.totalorder %s32, 1
      %p50 = por %p48, %p49
      %p51 = scmp.ne.s32.totalorder %s40, %s41
      %p52 = scmp.eq.s32.totalorder %s32, 0
      %p53 = por %p51, %p52
      %p54 = scmp.ne.s32.totalorder %s40, %s41
      %p55 = scmp.eq.s32.totalorder %s33, 1
      %p56 = por %p54, %p55
      %p58 = scmp.ne.s32.totalorder %s41, %s57
      %p59 = scmp.eq.s32.totalorder %s33, 0
      %p60 = por %p58, %p59
      %s61 = ssub.s32 %s27, %s34
      %p62 = scmp.eq.s32.totalorder %s61, 0
      %s64 = sadd.s32 %s63, 1
      %s65 = scalar_select %p62, %s63, %s64
      %p68 = pneg %p62
      %p69 = scmp.eq.s32.totalorder %s27, 1
      %p70 = por %p68, %p69
      %p71 = scmp.ne.s32.totalorder %s63, %s66
      %p72 = scmp.eq.s32.totalorder %s27, 0
      %p73 = por %p71, %p72
      %p74 = scmp.ne.s32.totalorder %s63, %s66
      %p75 = scmp.eq.s32.totalorder %s32, 1
      %p76 = por %p74, %p75
      %p77 = scmp.ne.s32.totalorder %s66, %s67
      %p78 = scmp.eq.s32.totalorder %s32, 0
      %p79 = por %p77, %p78
      %p80 = scmp.ne.s32.totalorder %s66, %s67
      %p81 = scmp.eq.s32.totalorder %s33, 1
      %p82 = por %p80, %p81
      %p84 = scmp.ne.s32.totalorder %s67, %s83
      %p85 = scmp.eq.s32.totalorder %s33, 0
      %p86 = por %p84, %p85
      %s87 = ssub.s32 %s27, %s34
      %p88 = scmp.eq.s32.totalorder %s87, 0
      %s90 = sadd.s32 %s89, 1
      %s91 = scalar_select %p88, %s89, %s90
      %p94 = pneg %p88
      %p95 = scmp.eq.s32.totalorder %s27, 1
      %p96 = por %p94, %p95
      %p97 = scmp.ne.s32.totalorder %s89, %s92
      %p98 = scmp.eq.s32.totalorder %s27, 0
      %p99 = por %p97, %p98
      %p100 = scmp.ne.s32.totalorder %s89, %s92
      %p101 = scmp.eq.s32.totalorder %s32, 1
      %p102 = por %p100, %p101
      %p103 = scmp.ne.s32.totalorder %s92, %s93
      %p104 = scmp.eq.s32.totalorder %s32, 0
      %p105 = por %p103, %p104
      %p106 = scmp.ne.s32.totalorder %s92, %s93
      %p107 = scmp.eq.s32.totalorder %s33, 1
      %p108 = por %p106, %p107
      %p110 = scmp.ne.s32.totalorder %s93, %s109
      %p111 = scmp.eq.s32.totalorder %s33, 0
      %p112 = por %p110, %p111
      %s114 = sadd.s32 %s113, 1
      %p117 = scmp.eq.s32.totalorder %s27, 1
      %p118 = scmp.ne.s32.totalorder %s113, %s115
      %p119 = scmp.eq.s32.totalorder %s27, 0
      %p120 = por %p118, %p119
      %p121 = scmp.ne.s32.totalorder %s113, %s115
      %p122 = scmp.eq.s32.totalorder %s32, 1
      %p123 = por %p121, %p122
      %p124 = scmp.ne.s32.totalorder %s115, %s116
      %p125 = scmp.eq.s32.totalorder %s32, 0
      %p126 = por %p124, %p125
      %p127 = scmp.ne.s32.totalorder %s115, %s116
      %p128 = scmp.eq.s32.totalorder %s33, 1
      %p129 = por %p127, %p128
      %p131 = scmp.ne.s32.totalorder %s116, %s130
      %p132 = scmp.eq.s32.totalorder %s33, 0
      %p133 = por %p131, %p132
      %s135 = sadd.s32 %s134, 1
      %p138 = scmp.eq.s32.totalorder %s27, 1
      %p139 = scmp.ne.s32.totalorder %s134, %s136
      %p140 = scmp.eq.s32.totalorder %s27, 0
      %p141 = por %p139, %p140
      %p142 = scmp.ne.s32.totalorder %s134, %s136
      %p143 = scmp.eq.s32.totalorder %s32, 1
      %p144 = por %p142, %p143
      %p145 = scmp.ne.s32.totalorder %s136, %s137
      %p146 = scmp.eq.s32.totalorder %s32, 0
      %p147 = por %p145, %p146
      %p148 = scmp.ne.s32.totalorder %s136, %s137
      %p149 = scmp.eq.s32.totalorder %s33, 1
      %p150 = por %p148, %p149
      %p152 = scmp.ne.s32.totalorder %s137, %s151
      %p153 = scmp.eq.s32.totalorder %s33, 0
      %p154 = por %p152, %p153
      %s156 = sadd.s32 %s155, 1
      %p159 = scmp.eq.s32.totalorder %s27, 1
      %p160 = scmp.ne.s32.totalorder %s155, %s157
      %p161 = scmp.eq.s32.totalorder %s27, 0
      %p162 = por %p160, %p161
      %p163 = scmp.ne.s32.totalorder %s155, %s157
      %p164 = scmp.eq.s32.totalorder %s32, 1
      %p165 = por %p163, %p164
      %p166 = scmp.ne.s32.totalorder %s157, %s158
      %p167 = scmp.eq.s32.totalorder %s32, 0
      %p168 = por %p166, %p167
      %p169 = scmp.ne.s32.totalorder %s157, %s158
      %p170 = scmp.eq.s32.totalorder %s33, 1
      %p171 = por %p169, %p170
      %p173 = scmp.ne.s32.totalorder %s158, %s172
      %p174 = scmp.eq.s32.totalorder %s33, 0
      %p175 = por %p173, %p174
      %s177 = sadd.s32 %s176, 1
      %p180 = scmp.eq.s32.totalorder %s27, 1
      %p181 = scmp.ne.s32.totalorder %s176, %s178
      %p182 = scmp.eq.s32.totalorder %s27, 0
      %p183 = por %p181, %p182
      %p184 = scmp.ne.s32.totalorder %s176, %s178
      %p185 = scmp.eq.s32.totalorder %s32, 1
      %p186 = por %p184, %p185
      %p187 = scmp.ne.s32.totalorder %s178, %s179
      %p188 = scmp.eq.s32.totalorder %s32, 0
      %p189 = por %p187, %p188
      %p190 = scmp.ne.s32.totalorder %s178, %s179
      %p191 = scmp.eq.s32.totalorder %s33, 1
      %p192 = por %p190, %p191
      %p194 = scmp.ne.s32.totalorder %s179, %s193
      %p195 = scmp.eq.s32.totalorder %s33, 0
      %p196 = por %p194, %p195
      %s198 = sadd.s32 %s197, 1
      %p201 = scmp.eq.s32.totalorder %s27, 1
      %p202 = scmp.ne.s32.totalorder %s197, %s199
      %p203 = scmp.eq.s32.totalorder %s27, 0
      %p204 = por %p202, %p203
      %p205 = scmp.ne.s32.totalorder %s197, %s199
      %p206 = scmp.eq.s32.totalorder %s32, 1
      %p207 = por %p205, %p206
      %p208 = scmp.ne.s32.totalorder %s199, %s200
      %p209 = scmp.eq.s32.totalorder %s32, 0
      %p210 = por %p208, %p209
      %p211 = scmp.ne.s32.totalorder %s199, %s200
      %p212 = scmp.eq.s32.totalorder %s33, 1
      %p213 = por %p211, %p212
      %p215 = scmp.ne.s32.totalorder %s200, %s214
      %p216 = scmp.eq.s32.totalorder %s33, 0
      %p217 = por %p215, %p216
      %s219 = sadd.s32 %s218, 1
      %p222 = scmp.eq.s32.totalorder %s27, 1
      %p223 = scmp.ne.s32.totalorder %s218, %s220
      %p224 = scmp.eq.s32.totalorder %s27, 0
      %p225 = por %p223, %p224
      %p226 = scmp.ne.s32.totalorder %s218, %s220
      %p227 = scmp.eq.s32.totalorder %s32, 1
      %p228 = por %p226, %p227
      %p229 = scmp.ne.s32.totalorder %s220, %s221
      %p230 = scmp.eq.s32.totalorder %s32, 0
      %p231 = por %p229, %p230
      %p232 = scmp.ne.s32.totalorder %s220, %s221
      %p233 = scmp.eq.s32.totalorder %s33, 1
      %p234 = por %p232, %p233
      %p236 = scmp.ne.s32.totalorder %s221, %s235
      %p237 = scmp.eq.s32.totalorder %s33, 0
      %p238 = por %p236, %p237
      %s240 = sadd.s32 %s239, 1
      %p243 = scmp.eq.s32.totalorder %s27, 1
      %p244 = scmp.ne.s32.totalorder %s239, %s241
      %p245 = scmp.eq.s32.totalorder %s27, 0
      %p246 = por %p244, %p245
      %p247 = scmp.ne.s32.totalorder %s239, %s241
      %p248 = scmp.eq.s32.totalorder %s32, 1
      %p249 = por %p247, %p248
      %p250 = scmp.ne.s32.totalorder %s241, %s242
      %p251 = scmp.eq.s32.totalorder %s32, 0
      %p252 = por %p250, %p251
      %p253 = scmp.ne.s32.totalorder %s241, %s242
      %p254 = scmp.eq.s32.totalorder %s33, 1
      %p255 = por %p253, %p254
      %p257 = scmp.ne.s32.totalorder %s242, %s256
      %p258 = scmp.eq.s32.totalorder %s33, 0
      %p259 = por %p257, %p258
      %s260 = ssub.s32 %s27, %s34
      %p261 = scmp.eq.s32.totalorder %s260, 0
      %s263 = sadd.s32 %s262, 1
      %s264 = scalar_select %p261, %s262, %s263
      %p267 = pneg %p261
      %p268 = scmp.eq.s32.totalorder %s27, 1
      %p269 = por %p267, %p268
      %p270 = scmp.ne.s32.totalorder %s262, %s265
      %p271 = scmp.eq.s32.totalorder %s27, 0
      %p272 = por %p270, %p271
      %p273 = scmp.ne.s32.totalorder %s262, %s265
      %p274 = scmp.eq.s32.totalorder %s32, 1
      %p275 = por %p273, %p274
      %p276 = scmp.ne.s32.totalorder %s265, %s266
      %p277 = scmp.eq.s32.totalorder %s32, 0
      %p278 = por %p276, %p277
      %p279 = scmp.ne.s32.totalorder %s265, %s266
      %p280 = scmp.eq.s32.totalorder %s33, 1
      %p281 = por %p279, %p280
      %p283 = scmp.ne.s32.totalorder %s266, %s282
      %p284 = scmp.eq.s32.totalorder %s33, 0
      %p285 = por %p283, %p284
      %p286 = scmp.le.s32.totalorder 1, %s27
      %p287 = scmp.lt.s32.totalorder %s27, 3
      %p288 = pnand %p286, %p287
      %p289 = pneg %p288
      // Predicated region
      $region9: #{tpu_custom_call.1} parent=5 // pred_check
        _
      $region10: #{tpu_custom_call.1} parent=5 // pred_check_branch
        %291 = sbr.rel (%p288) target = $region12
      $region11: #{tpu_custom_call.1} parent=5 // pred_region
        %s292 = ssub.s32 %s27, 1
        // Predicated region
        $region13: #{tpu_custom_call.1} parent=11 // pred_check
          %p293 = pneg %p126
        $region14: #{tpu_custom_call.1} parent=11 // pred_check_branch
          %295 = sbr.rel (%p293) target = $region16
        $region15: #{tpu_custom_call.1} parent=11 // pred_region
          %s297 = ssub.s32 256, 256
          %298 = vsyncadd [#allocation9], %s297
          %s299 = sshll.u32 [#allocation8], 4
          %s300 = int_to_ptr.vmem [resolvable:$true] %s299
          %305 = dma.hbm_to_vmem [thread:$0]  %s3, 256, %s300, [#allocation9], 64, 64, 4
        $region16: #{tpu_custom_call.1} parent=11 // pred_fallthru
          _
        // Predicated region
        $region17: #{tpu_custom_call.1} parent=11 // pred_check
          %p306 = pneg %p147
        $region18: #{tpu_custom_call.1} parent=11 // pred_check_branch
          %308 = sbr.rel (%p306) target = $region20
        $region19: #{tpu_custom_call.1} parent=11 // pred_region
          %s310 = ssub.s32 256, 256
          %311 = vsyncadd [#allocation9], %s310
          %s312 = sshll.u32 [#allocation10], 4
          %s313 = int_to_ptr.vmem [resolvable:$true] %s312
          %318 = dma.hbm_to_vmem [thread:$0]  %s4, 256, %s313, [#allocation9], 64, 64, 4
        $region20: #{tpu_custom_call.1} parent=11 // pred_fallthru
          _
        // Predicated region
        $region21: #{tpu_custom_call.1} parent=11 // pred_check
          %p319 = pneg %p168
        $region22: #{tpu_custom_call.1} parent=11 // pred_check_branch
          %321 = sbr.rel (%p319) target = $region24
        $region23: #{tpu_custom_call.1} parent=11 // pred_region
          _
        $region24: #{tpu_custom_call.1} parent=11 // pred_fallthru
          _
        // Predicated region
        $region25: #{tpu_custom_call.1} parent=11 // pred_check
          %p322 = pneg %p189
        $region26: #{tpu_custom_call.1} parent=11 // pred_check_branch
          %324 = sbr.rel (%p322) target = $region28
        $region27: #{tpu_custom_call.1} parent=11 // pred_region
          %s326 = ssub.s32 256, 256
          %327 = vsyncadd [#allocation12], %s326
          %s328 = sshll.u32 [#allocation11], 4
          %s329 = int_to_ptr.vmem [resolvable:$true] %s328
          %334 = dma.hbm_to_vmem [thread:$0]  %s6, 256, %s329, [#allocation12], 64, 64, 4
        $region28: #{tpu_custom_call.1} parent=11 // pred_fallthru
          _
        // Predicated region
        $region29: #{tpu_custom_call.1} parent=11 // pred_check
          %p335 = pneg %p210
        $region30: #{tpu_custom_call.1} parent=11 // pred_check_branch
          %337 = sbr.rel (%p335) target = $region32
        $region31: #{tpu_custom_call.1} parent=11 // pred_region
          _
        $region32: #{tpu_custom_call.1} parent=11 // pred_fallthru
          _
        // Predicated region
        $region33: #{tpu_custom_call.1} parent=11 // pred_check
          %p338 = pneg %p231
        $region34: #{tpu_custom_call.1} parent=11 // pred_check_branch
          %340 = sbr.rel (%p338) target = $region36
        $region35: #{tpu_custom_call.1} parent=11 // pred_region
          _
        $region36: #{tpu_custom_call.1} parent=11 // pred_fallthru
          _
        // Predicated region
        $region37: #{tpu_custom_call.1} parent=11 // pred_check
          %p341 = pneg %p252
        $region38: #{tpu_custom_call.1} parent=11 // pred_check_branch
          %343 = sbr.rel (%p341) target = $region40
        $region39: #{tpu_custom_call.1} parent=11 // pred_region
          _
        $region40: #{tpu_custom_call.1} parent=11 // pred_fallthru
          _
      $region12: #{tpu_custom_call.1} parent=5 // pred_fallthru
        _
      %p344 = scmp.lt.s32.totalorder %s27, 2
      // Predicated region
      $region41: #{tpu_custom_call.1} parent=5 // pred_check
        %p345 = pneg %p344
      $region42: #{tpu_custom_call.1} parent=5 // pred_check_branch
        %347 = sbr.rel (%p345) target = $region44
      $region43: #{tpu_custom_call.1} parent=5 // pred_region
        // Predicated region
        $region45: #{tpu_custom_call.1} parent=43 // pred_check
          %p348 = pneg %p47
        $region46: #{tpu_custom_call.1} parent=43 // pred_check_branch
          %350 = sbr.rel (%p348) target = $region48
        $region47: #{tpu_custom_call.1} parent=43 // pred_region
          %s351 = sand.u32 %s37, 1
          %s352 = scalar_lea.sflag [#allocation3], %s351
          %s353 = sand.u32 %s37, 1
          %s354 = smul.addr %s353, 8
          %s355 = scalar_lea.vmem [#allocation2], %s354
          %s357 = ssub.s32 128, 128
          %358 = vsyncadd %s352, %s357
          %s359 = smul.addr %s27, 128
          %s360 = scalar_lea.hbm %s0, %s359
          %s362 = sshll.u32 %s355, 4
          %s363 = int_to_ptr.vmem [resolvable:$true] %s362
          %365 = dma.hbm_to_vmem [thread:$0]  %s360, 128, %s363, %s352
        $region48: #{tpu_custom_call.1} parent=43 // pred_fallthru
          _
        // Predicated region
        $region49: #{tpu_custom_call.1} parent=43 // pred_check
          %p366 = pneg %p73
        $region50: #{tpu_custom_call.1} parent=43 // pred_check_branch
          %368 = sbr.rel (%p366) target = $region52
        $region51: #{tpu_custom_call.1} parent=43 // pred_region
          %s369 = sand.u32 %s27, 1
          %s370 = scalar_lea.sflag [#allocation6], %s369
          %s371 = sand.u32 %s63, 1
          %s372 = smul.addr %s371, 8
          %s373 = scalar_lea.vmem [#allocation5], %s372
          %s375 = ssub.s32 128, 128
          %376 = vsyncadd %s370, %s375
          %s377 = smul.addr %s27, 128
          %s378 = scalar_lea.hbm %s1, %s377
          %s380 = sshll.u32 %s373, 4
          %s381 = int_to_ptr.vmem [resolvable:$true] %s380
          %383 = dma.hbm_to_vmem [thread:$0]  %s378, 128, %s381, %s370
        $region52: #{tpu_custom_call.1} parent=43 // pred_fallthru
          _
        // Predicated region
        $region53: #{tpu_custom_call.1} parent=43 // pred_check
          %p384 = pneg %p99
        $region54: #{tpu_custom_call.1} parent=43 // pred_check_branch
          %386 = sbr.rel (%p384) target = $region56
        $region55: #{tpu_custom_call.1} parent=43 // pred_region
          %s387 = sand.u32 %s27, 1
          %s388 = scalar_lea.sflag [#allocation6], %s387
          %s389 = sand.u32 %s89, 1
          %s390 = smul.addr %s389, 8
          %s391 = scalar_lea.vmem [#allocation7], %s390
          %s393 = ssub.s32 128, 128
          %394 = vsyncadd %s388, %s393
          %s395 = smul.addr %s27, 128
          %s396 = scalar_lea.hbm %s2, %s395
          %s398 = sshll.u32 %s391, 4
          %s399 = int_to_ptr.vmem [resolvable:$true] %s398
          %401 = dma.hbm_to_vmem [thread:$0]  %s396, 128, %s399, %s388
        $region56: #{tpu_custom_call.1} parent=43 // pred_fallthru
          _
      $region44: #{tpu_custom_call.1} parent=5 // pred_fallthru
        _
      %p402 = scmp.le.s32.totalorder 1, %s27
      %p403 = scmp.lt.s32.totalorder %s27, 3
      %p404 = pnand %p402, %p403
      %p405 = pneg %p404
      // Predicated region
      $region57: #{tpu_custom_call.1} parent=5 // pred_check
        _
      $region58: #{tpu_custom_call.1} parent=5 // pred_check_branch
        %407 = sbr.rel (%p404) target = $region60
      $region59: #{tpu_custom_call.1} parent=5 // pred_region
        %s408 = ssub.s32 %s27, 1
        %s409 = sand.u32 %s40, 1
        %s410 = scalar_lea.sflag [#allocation3], %s409
        %s411 = sand.u32 %s40, 1
        %s412 = smul.addr %s411, 8
        %s413 = scalar_lea.vmem [#allocation2], %s412
        // Predicated region
        $region61: #{tpu_custom_call.1} parent=59 // pred_check
          %p414 = pneg %p53
        $region62: #{tpu_custom_call.1} parent=59 // pred_check_branch
          %416 = sbr.rel (%p414) target = $region64
        $region63: #{tpu_custom_call.1} parent=59 // pred_region
          %417 = dma.done %s410, 128
        $region64: #{tpu_custom_call.1} parent=59 // pred_fallthru
          _
        %s418 = sand.u32 %s32, 1
        %s419 = scalar_lea.sflag [#allocation6], %s418
        %s420 = sand.u32 %s66, 1
        %s421 = smul.addr %s420, 8
        %s422 = scalar_lea.vmem [#allocation5], %s421
        // Predicated region
        $region65: #{tpu_custom_call.1} parent=59 // pred_check
          %p423 = pneg %p79
        $region66: #{tpu_custom_call.1} parent=59 // pred_check_branch
          %425 = sbr.rel (%p423) target = $region68
        $region67: #{tpu_custom_call.1} parent=59 // pred_region
          %426 = dma.done %s419, 128
        $region68: #{tpu_custom_call.1} parent=59 // pred_fallthru
          _
        %s427 = sand.u32 %s32, 1
        %s428 = scalar_lea.sflag [#allocation6], %s427
        %s429 = sand.u32 %s92, 1
        %s430 = smul.addr %s429, 8
        %s431 = scalar_lea.vmem [#allocation7], %s430
        // Predicated region
        $region69: #{tpu_custom_call.1} parent=59 // pred_check
          %p432 = pneg %p105
        $region70: #{tpu_custom_call.1} parent=59 // pred_check_branch
          %434 = sbr.rel (%p432) target = $region72
        $region71: #{tpu_custom_call.1} parent=59 // pred_region
          %435 = dma.done %s428, 128
        $region72: #{tpu_custom_call.1} parent=59 // pred_fallthru
          _
        // Predicated region
        $region73: #{tpu_custom_call.1} parent=59 // pred_check
          %p436 = pneg %p126
        $region74: #{tpu_custom_call.1} parent=59 // pred_check_branch
          %438 = sbr.rel (%p436) target = $region76
        $region75: #{tpu_custom_call.1} parent=59 // pred_region
          %439 = dma.done [#allocation9], 256
        $region76: #{tpu_custom_call.1} parent=59 // pred_fallthru
          _
        // Predicated region
        $region77: #{tpu_custom_call.1} parent=59 // pred_check
          %p440 = pneg %p147
        $region78: #{tpu_custom_call.1} parent=59 // pred_check_branch
          %442 = sbr.rel (%p440) target = $region80
        $region79: #{tpu_custom_call.1} parent=59 // pred_region
          %443 = dma.done [#allocation9], 256
        $region80: #{tpu_custom_call.1} parent=59 // pred_fallthru
          _
        // Predicated region
        $region81: #{tpu_custom_call.1} parent=59 // pred_check
          %p444 = pneg %p189
        $region82: #{tpu_custom_call.1} parent=59 // pred_check_branch
          %446 = sbr.rel (%p444) target = $region84
        $region83: #{tpu_custom_call.1} parent=59 // pred_region
          %447 = dma.done [#allocation12], 256
        $region84: #{tpu_custom_call.1} parent=59 // pred_fallthru
          _
        %s448 = sand.u32 %s40, 1
        %s449 = scalar_lea.sflag [#allocation3], %s448
        %s450 = sand.u32 %s40, 1
        %s451 = smul.addr %s450, 8
        %s452 = scalar_lea.vmem [#allocation2], %s451
        %p453 = pneg %p53
        %p454 = pneg %p50
        %s455 = sand.u32 %s32, 1
        %s456 = scalar_lea.sflag [#allocation6], %s455
        %s457 = sand.u32 %s66, 1
        %s458 = smul.addr %s457, 8
        %s459 = scalar_lea.vmem [#allocation5], %s458
        %p460 = pneg %p79
        %p461 = pneg %p76
        %s462 = sand.u32 %s32, 1
        %s463 = scalar_lea.sflag [#allocation6], %s462
        %s464 = sand.u32 %s92, 1
        %s465 = smul.addr %s464, 8
        %s466 = scalar_lea.vmem [#allocation7], %s465
        %p467 = pneg %p105
        %p468 = pneg %p102
        %p469 = pneg %p126
        %p470 = pneg %p123
        %p471 = pneg %p147
        %p472 = pneg %p144
        %p473 = pneg %p168
        %p474 = pneg %p165
        %p475 = pneg %p189
        %p476 = pneg %p186
        %p477 = pneg %p210
        %p478 = pneg %p207
        %p479 = pneg %p231
        %p480 = pneg %p228
        %p481 = pneg %p252
        %p482 = pneg %p249
        %p483 = pneg %p278
        %p484 = pneg %p275
        %s485 = sand.u32 %s265, 1
        %s486 = scalar_lea.sflag [#allocation4], %s485
        %s487 = sand.u32 %s265, 1
        %s488 = smul.addr %s487, 8
        %s489 = scalar_lea.vmem [#allocation13], %s488
        %v491 = vld [vmem:[%s413] sm:$0xff]
        %v492 = vld [vmem:[%s422] sm:$0xff]
        %v493 = vld [vmem:[%s431] sm:$0xff]
        %v494 = vpack.c.bf16 %v491, %v491
        %v495 = vld [vmem:[#allocation8] sm:$0xf]
        %v496 = vld [vmem:[#allocation8 + $0x4] sm:$0xf]
        %v497 = vld [vmem:[#allocation8 + $0x8] sm:$0xf]
        %v498 = vld [vmem:[#allocation8 + $0xc] sm:$0xf]
        %v503 = vunpack.c.l.b16 %v495
        %v504 = vunpack.c.l.b16 %v496
        %v505 = vunpack.c.l.b16 %v497
        %v506 = vunpack.c.l.b16 %v498
        %v507 = vpack.c.b16 %v504, %v503
        %v508 = vpack.c.b16 %v506, %v505
        %vm511 = vcmask 261120
        %v513 = vsel %vm511, %v494, 0
        %515 = vmatprep.subr.bf16.mxu0 0
        %516 = vmatpush1.bf16.msra.mxu0 %v507
        %517 = vmatprep.subr.bf16.mxu0 0
        %518 = vmatpush1.bf16.msra.mxu0 %v508
        %519 = vmatprep.subr.bf16.mxu0 0
        %520 = vmatpush1.bf16.msra.mxu0 0
        %521 = vmatprep.subr.bf16.mxu0 0
        %522 = vmatpush1.bf16.msra.mxu0 0
        %523 = vmatprep.subr.bf16.mxu0 0
        %524 = vmatpush1.bf16.msra.mxu0 0
        %525 = vmatprep.subr.bf16.mxu0 0
        %526 = vmatpush1.bf16.msra.mxu0 0
        %527 = vmatprep.subr.bf16.mxu0 0
        %528 = vmatpush1.bf16.msra.mxu0 0
        %529 = vmatprep.subr.bf16.mxu0 0
        %530 = vmatpush1.bf16.msra.mxu0 0
        %531 = vmatprep.subr.bf16.mxu0 0
        %532 = vmatpush1.bf16.msra.mxu0 0
        %533 = vmatprep.subr.bf16.mxu0 0
        %534 = vmatpush1.bf16.msra.mxu0 0
        %535 = vmatprep.subr.bf16.mxu0 0
        %536 = vmatpush1.bf16.msra.mxu0 0
        %537 = vmatprep.subr.bf16.mxu0 0
        %538 = vmatpush1.bf16.msra.mxu0 0
        %539 = vmatprep.subr.bf16.mxu0 0
        %540 = vmatpush1.bf16.msra.mxu0 0
        %541 = vmatprep.subr.bf16.mxu0 0
        %542 = vmatpush1.bf16.msra.mxu0 0
        %543 = vmatprep.subr.bf16.mxu0 0
        %544 = vmatpush1.bf16.msra.mxu0 0
        %545 = vmatprep.subr.bf16.mxu0 0
        %546 = vmatpush1.bf16.msra.mxu0 0
        %547 = vmatprep.mubr.bf16.mxu0 0
        %548 = vmatmul.mubr.bf16.gmra.mrb[0].mxu0 %v513
        %v549 = vpop.f32.mrb[0].mxu0
        %v550 = vadd.f32 0.0, %v549
        %v551 = vpop.f32.mrb[0].mxu0
        %v552 = vpop.f32.mrb[0].mxu0
        %v553 = vpop.f32.mrb[0].mxu0
        %554 = vdwg.mxu0
        %v555 = vpack.c.bf16 %v492, %v492
        %v556 = vld [vmem:[#allocation10] sm:$0xf]
        %v557 = vld [vmem:[#allocation10 + $0x4] sm:$0xf]
        %v558 = vld [vmem:[#allocation10 + $0x8] sm:$0xf]
        %v559 = vld [vmem:[#allocation10 + $0xc] sm:$0xf]
        %v564 = vunpack.c.l.b16 %v556
        %v565 = vunpack.c.l.b16 %v557
        %v566 = vunpack.c.l.b16 %v558
        %v567 = vunpack.c.l.b16 %v559
        %v568 = vpack.c.b16 %v565, %v564
        %v569 = vpack.c.b16 %v567, %v566
        %v573 = vsel %vm511, %v555, 0
        %575 = vmatprep.subr.bf16.mxu0 0
        %576 = vmatpush1.bf16.msra.mxu0 %v568
        %577 = vmatprep.subr.bf16.mxu0 0
        %578 = vmatpush1.bf16.msra.mxu0 %v569
        %579 = vmatprep.subr.bf16.mxu0 0
        %580 = vmatpush1.bf16.msra.mxu0 0
        %581 = vmatprep.subr.bf16.mxu0 0
        %582 = vmatpush1.bf16.msra.mxu0 0
        %583 = vmatprep.subr.bf16.mxu0 0
        %584 = vmatpush1.bf16.msra.mxu0 0
        %585 = vmatprep.subr.bf16.mxu0 0
        %586 = vmatpush1.bf16.msra.mxu0 0
        %587 = vmatprep.subr.bf16.mxu0 0
        %588 = vmatpush1.bf16.msra.mxu0 0
        %589 = vmatprep.subr.bf16.mxu0 0
        %590 = vmatpush1.bf16.msra.mxu0 0
        %591 = vmatprep.subr.bf16.mxu0 0
        %592 = vmatpush1.bf16.msra.mxu0 0
        %593 = vmatprep.subr.bf16.mxu0 0
        %594 = vmatpush1.bf16.msra.mxu0 0
        %595 = vmatprep.subr.bf16.mxu0 0
        %596 = vmatpush1.bf16.msra.mxu0 0
        %597 = vmatprep.subr.bf16.mxu0 0
        %598 = vmatpush1.bf16.msra.mxu0 0
        %599 = vmatprep.subr.bf16.mxu0 0
        %600 = vmatpush1.bf16.msra.mxu0 0
        %601 = vmatprep.subr.bf16.mxu0 0
        %602 = vmatpush1.bf16.msra.mxu0 0
        %603 = vmatprep.subr.bf16.mxu0 0
        %604 = vmatpush1.bf16.msra.mxu0 0
        %605 = vmatprep.subr.bf16.mxu0 0
        %606 = vmatpush1.bf16.msra.mxu0 0
        %607 = vmatprep.mubr.bf16.mxu0 0
        %608 = vmatmul.mubr.bf16.gmra.mrb[0].mxu0 %v573
        %v609 = vpop.f32.mrb[0].mxu0
        %v610 = vadd.f32 0.0, %v609
        %v611 = vpop.f32.mrb[0].mxu0
        %v612 = vpop.f32.mrb[0].mxu0
        %v613 = vpop.f32.mrb[0].mxu0
        %614 = vdwg.mxu0
        %v615 = vpack.c.bf16 %v493, %v493
        %v616 = vld [vmem:[%s5] sm:$0xf]
        %v617 = vld [vmem:[%s5 + $0x4] sm:$0xf]
        %v618 = vld [vmem:[%s5 + $0x8] sm:$0xf]
        %v619 = vld [vmem:[%s5 + $0xc] sm:$0xf]
        %v624 = vunpack.c.l.b16 %v616
        %v625 = vunpack.c.l.b16 %v617
        %v626 = vunpack.c.l.b16 %v618
        %v627 = vunpack.c.l.b16 %v619
        %v628 = vpack.c.b16 %v625, %v624
        %v629 = vpack.c.b16 %v627, %v626
        %v633 = vsel %vm511, %v615, 0
        %635 = vmatprep.subr.bf16.mxu0 0
        %636 = vmatpush1.bf16.msra.mxu0 %v628
        %637 = vmatprep.subr.bf16.mxu0 0
        %638 = vmatpush1.bf16.msra.mxu0 %v629
        %639 = vmatprep.subr.bf16.mxu0 0
        %640 = vmatpush1.bf16.msra.mxu0 0
        %641 = vmatprep.subr.bf16.mxu0 0
        %642 = vmatpush1.bf16.msra.mxu0 0
        %643 = vmatprep.subr.bf16.mxu0 0
        %644 = vmatpush1.bf16.msra.mxu0 0
        %645 = vmatprep.subr.bf16.mxu0 0
        %646 = vmatpush1.bf16.msra.mxu0 0
        %647 = vmatprep.subr.bf16.mxu0 0
        %648 = vmatpush1.bf16.msra.mxu0 0
        %649 = vmatprep.subr.bf16.mxu0 0
        %650 = vmatpush1.bf16.msra.mxu0 0
        %651 = vmatprep.subr.bf16.mxu0 0
        %652 = vmatpush1.bf16.msra.mxu0 0
        %653 = vmatprep.subr.bf16.mxu0 0
        %654 = vmatpush1.bf16.msra.mxu0 0
        %655 = vmatprep.subr.bf16.mxu0 0
        %656 = vmatpush1.bf16.msra.mxu0 0
        %657 = vmatprep.subr.bf16.mxu0 0
        %658 = vmatpush1.bf16.msra.mxu0 0
        %659 = vmatprep.subr.bf16.mxu0 0
        %660 = vmatpush1.bf16.msra.mxu0 0
        %661 = vmatprep.subr.bf16.mxu0 0
        %662 = vmatpush1.bf16.msra.mxu0 0
        %663 = vmatprep.subr.bf16.mxu0 0
        %664 = vmatpush1.bf16.msra.mxu0 0
        %665 = vmatprep.subr.bf16.mxu0 0
        %666 = vmatpush1.bf16.msra.mxu0 0
        %667 = vmatprep.mubr.bf16.mxu0 0
        %668 = vmatmul.mubr.bf16.gmra.mrb[0].mxu0 %v633
        %v669 = vpop.f32.mrb[0].mxu0
        %v670 = vadd.f32 0.0, %v669
        %v671 = vpop.f32.mrb[0].mxu0
        %v672 = vpop.f32.mrb[0].mxu0
        %v673 = vpop.f32.mrb[0].mxu0
        %674 = vdwg.mxu0
        %v675 = vld [vmem:[#allocation11] sm:$0xf]
        %v676 = vld [vmem:[#allocation11 + $0x4] sm:$0xf]
        %v677 = vld [vmem:[#allocation11 + $0x8] sm:$0xf]
        %v678 = vld [vmem:[#allocation11 + $0xc] sm:$0xf]
        %v679 = vpack.c.bf16 %v550, %v550
        %v680 = vpack.c.bf16 %v610, %v610
        %vm681 = vcmask 130048
        %v683 = vsel %vm681, %v679, 0
        %v686 = vsel %vm681, %v680, 0
        %688 = vmatprep.subr.bf16.mxu0 0
        %689 = vmatpush1.bf16.xpose.msra.mxu0 %v686
        %690 = vmatprep.subr.bf16.mxu0 0
        %691 = vmatpush1.bf16.xpose.msra.mxu0 0
        %692 = vmatprep.subr.bf16.mxu0 0
        %693 = vmatpush1.bf16.xpose.msra.mxu0 0
        %694 = vmatprep.subr.bf16.mxu0 0
        %695 = vmatpush1.bf16.xpose.msra.mxu0 0
        %696 = vmatprep.subr.bf16.mxu0 0
        %697 = vmatpush1.bf16.xpose.msra.mxu0 0
        %698 = vmatprep.subr.bf16.mxu0 0
        %699 = vmatpush1.bf16.xpose.msra.mxu0 0
        %700 = vmatprep.subr.bf16.mxu0 0
        %701 = vmatpush1.bf16.xpose.msra.mxu0 0
        %702 = vmatprep.subr.bf16.mxu0 0
        %703 = vmatpush1.bf16.xpose.msra.mxu0 0
        %704 = vmatprep.subr.bf16.mxu0 0
        %705 = vmatpush1.bf16.xpose.msra.mxu0 0
        %706 = vmatprep.subr.bf16.mxu0 0
        %707 = vmatpush1.bf16.xpose.msra.mxu0 0
        %708 = vmatprep.subr.bf16.mxu0 0
        %709 = vmatpush1.bf16.xpose.msra.mxu0 0
        %710 = vmatprep.subr.bf16.mxu0 0
        %711 = vmatpush1.bf16.xpose.msra.mxu0 0
        %712 = vmatprep.subr.bf16.mxu0 0
        %713 = vmatpush1.bf16.xpose.msra.mxu0 0
        %714 = vmatprep.subr.bf16.mxu0 0
        %715 = vmatpush1.bf16.xpose.msra.mxu0 0
        %716 = vmatprep.subr.bf16.mxu0 0
        %717 = vmatpush1.bf16.xpose.msra.mxu0 0
        %718 = vmatprep.subr.bf16.mxu0 0
        %719 = vmatpush1.bf16.xpose.msra.mxu0 0
        %720 = vmatprep.mubr.bf16.mxu0 0
        %721 = vmatmul.mubr.bf16.gmra.mrb[0].mxu0 %v683
        %v722 = vpop.f32.mrb[0].mxu0
        %v723 = vadd.f32 0.0, %v722
        %v724 = vpop.f32.mrb[0].mxu0
        %v725 = vpop.f32.mrb[0].mxu0
        %v726 = vpop.f32.mrb[0].mxu0
        %727 = vdwg.mxu0
        %v728 = vmul.f32 %v723, 0.25
        %vm729 = vcmask 64512
        %v730 = vsel %vm729, %v728, -inf
        %731 = vmax.xlane.f32.xlu0 %v730
        %v732 = vpop.xlane.xlu0 %731
        %v733 = vsub.f32 %v728, %v732
        %v734 = vmul.f32 %v733, 1.442695
        %v735 = vpow.pop %v734
        %v736 = vsel %vm729, %v735, 0.0
        %737 = vadd.xlane.f32.xlu0 %v736
        %v738 = vpop.xlane.xlu0 %737
        %v739 = vrcp.pop %v738
        %v740 = vmul.f32 %v735, %v739
        %v741 = vpack.c.bf16 %v740, %v740
        %v742 = vpack.c.bf16 %v670, %v670
        %v744 = vsel %vm729, %v741, 0
        %vm746 = vcmask 1043456
        %v748 = vsel %vm746, %v742, 0
        %750 = vmatprep.subr.bf16.mxu0 0
        %751 = vmatpush1.bf16.msra.mxu0 %v748
        %752 = vmatprep.subr.bf16.mxu0 0
        %753 = vmatpush1.bf16.msra.mxu0 0
        %754 = vmatprep.subr.bf16.mxu0 0
        %755 = vmatpush1.bf16.msra.mxu0 0
        %756 = vmatprep.subr.bf16.mxu0 0
        %757 = vmatpush1.bf16.msra.mxu0 0
        %758 = vmatprep.subr.bf16.mxu0 0
        %759 = vmatpush1.bf16.msra.mxu0 0
        %760 = vmatprep.subr.bf16.mxu0 0
        %761 = vmatpush1.bf16.msra.mxu0 0
        %762 = vmatprep.subr.bf16.mxu0 0
        %763 = vmatpush1.bf16.msra.mxu0 0
        %764 = vmatprep.subr.bf16.mxu0 0
        %765 = vmatpush1.bf16.msra.mxu0 0
        %766 = vmatprep.subr.bf16.mxu0 0
        %767 = vmatpush1.bf16.msra.mxu0 0
        %768 = vmatprep.subr.bf16.mxu0 0
        %769 = vmatpush1.bf16.msra.mxu0 0
        %770 = vmatprep.subr.bf16.mxu0 0
        %771 = vmatpush1.bf16.msra.mxu0 0
        %772 = vmatprep.subr.bf16.mxu0 0
        %773 = vmatpush1.bf16.msra.mxu0 0
        %774 = vmatprep.subr.bf16.mxu0 0
        %775 = vmatpush1.bf16.msra.mxu0 0
        %776 = vmatprep.subr.bf16.mxu0 0
        %777 = vmatpush1.bf16.msra.mxu0 0
        %778 = vmatprep.subr.bf16.mxu0 0
        %779 = vmatpush1.bf16.msra.mxu0 0
        %780 = vmatprep.subr.bf16.mxu0 0
        %781 = vmatpush1.bf16.msra.mxu0 0
        %782 = vmatprep.mubr.bf16.mxu0 0
        %783 = vmatmul.mubr.bf16.gmra.mrb[0].mxu0 %v744
        %v784 = vpop.f32.mrb[0].mxu0
        %v785 = vadd.f32 0.0, %v784
        %v786 = vpop.f32.mrb[0].mxu0
        %v787 = vpop.f32.mrb[0].mxu0
        %v788 = vpop.f32.mrb[0].mxu0
        %789 = vdwg.mxu0
        %v790 = vpack.c.bf16 %v785, %v785
        %792 = vrot.lane.b32.xlu0 %v679, 112
        %v793 = vpop.permute.xlu0 %792
        %795 = vrot.lane.b32.xlu0 %v680, 112
        %v796 = vpop.permute.xlu0 %795
        %v798 = vsel %vm681, %v793, 0
        %v801 = vsel %vm681, %v796, 0
        %803 = vmatprep.subr.bf16.mxu0 0
        %804 = vmatpush1.bf16.xpose.msra.mxu0 %v801
        %805 = vmatprep.subr.bf16.mxu0 0
        %806 = vmatpush1.bf16.xpose.msra.mxu0 0
        %807 = vmatprep.subr.bf16.mxu0 0
        %808 = vmatpush1.bf16.xpose.msra.mxu0 0
        %809 = vmatprep.subr.bf16.mxu0 0
        %810 = vmatpush1.bf16.xpose.msra.mxu0 0
        %811 = vmatprep.subr.bf16.mxu0 0
        %812 = vmatpush1.bf16.xpose.msra.mxu0 0
        %813 = vmatprep.subr.bf16.mxu0 0
        %814 = vmatpush1.bf16.xpose.msra.mxu0 0
        %815 = vmatprep.subr.bf16.mxu0 0
        %816 = vmatpush1.bf16.xpose.msra.mxu0 0
        %817 = vmatprep.subr.bf16.mxu0 0
        %818 = vmatpush1.bf16.xpose.msra.mxu0 0
        %819 = vmatprep.subr.bf16.mxu0 0
        %820 = vmatpush1.bf16.xpose.msra.mxu0 0
        %821 = vmatprep.subr.bf16.mxu0 0
        %822 = vmatpush1.bf16.xpose.msra.mxu0 0
        %823 = vmatprep.subr.bf16.mxu0 0
        %824 = vmatpush1.bf16.xpose.msra.mxu0 0
        %825 = vmatprep.subr.bf16.mxu0 0
        %826 = vmatpush1.bf16.xpose.msra.mxu0 0
        %827 = vmatprep.subr.bf16.mxu0 0
        %828 = vmatpush1.bf16.xpose.msra.mxu0 0
        %829 = vmatprep.subr.bf16.mxu0 0
        %830 = vmatpush1.bf16.xpose.msra.mxu0 0
        %831 = vmatprep.subr.bf16.mxu0 0
        %832 = vmatpush1.bf16.xpose.msra.mxu0 0
        %833 = vmatprep.subr.bf16.mxu0 0
        %834 = vmatpush1.bf16.xpose.msra.mxu0 0
        %835 = vmatprep.mubr.bf16.mxu0 0
        %836 = vmatmul.mubr.bf16.gmra.mrb[0].mxu0 %v798
        %v837 = vpop.f32.mrb[0].mxu0
        %v838 = vadd.f32 0.0, %v837
        %v839 = vpop.f32.mrb[0].mxu0
        %v840 = vpop.f32.mrb[0].mxu0
        %v841 = vpop.f32.mrb[0].mxu0
        %842 = vdwg.mxu0
        %v843 = vmul.f32 %v838, 0.25
        %v844 = vsel %vm729, %v843, -inf
        %845 = vmax.xlane.f32.xlu0 %v844
        %v846 = vpop.xlane.xlu0 %845
        %v847 = vsub.f32 %v843, %v846
        %v848 = vmul.f32 %v847, 1.442695
        %v849 = vpow.pop %v848
        %v850 = vsel %vm729, %v849, 0.0
        %851 = vadd.xlane.f32.xlu0 %v850
        %v852 = vpop.xlane.xlu0 %851
        %v853 = vrcp.pop %v852
        %v854 = vmul.f32 %v849, %v853
        %v855 = vpack.c.bf16 %v854, %v854
        %857 = vrot.lane.b32.xlu0 %v742, 112
        %v858 = vpop.permute.xlu0 %857
        %v860 = vsel %vm729, %v855, 0
        %v863 = vsel %vm746, %v858, 0
        %865 = vmatprep.subr.bf16.mxu0 0
        %866 = vmatpush1.bf16.msra.mxu0 %v863
        %867 = vmatprep.subr.bf16.mxu0 0
        %868 = vmatpush1.bf16.msra.mxu0 0
        %869 = vmatprep.subr.bf16.mxu0 0
        %870 = vmatpush1.bf16.msra.mxu0 0
        %871 = vmatprep.subr.bf16.mxu0 0
        %872 = vmatpush1.bf16.msra.mxu0 0
        %873 = vmatprep.subr.bf16.mxu0 0
        %874 = vmatpush1.bf16.msra.mxu0 0
        %875 = vmatprep.subr.bf16.mxu0 0
        %876 = vmatpush1.bf16.msra.mxu0 0
        %877 = vmatprep.subr.bf16.mxu0 0
        %878 = vmatpush1.bf16.msra.mxu0 0
        %879 = vmatprep.subr.bf16.mxu0 0
        %880 = vmatpush1.bf16.msra.mxu0 0
        %881 = vmatprep.subr.bf16.mxu0 0
        %882 = vmatpush1.bf16.msra.mxu0 0
        %883 = vmatprep.subr.bf16.mxu0 0
        %884 = vmatpush1.bf16.msra.mxu0 0
        %885 = vmatprep.subr.bf16.mxu0 0
        %886 = vmatpush1.bf16.msra.mxu0 0
        %887 = vmatprep.subr.bf16.mxu0 0
        %888 = vmatpush1.bf16.msra.mxu0 0
        %889 = vmatprep.subr.bf16.mxu0 0
        %890 = vmatpush1.bf16.msra.mxu0 0
        %891 = vmatprep.subr.bf16.mxu0 0
        %892 = vmatpush1.bf16.msra.mxu0 0
        %893 = vmatprep.subr.bf16.mxu0 0
        %894 = vmatpush1.bf16.msra.mxu0 0
        %895 = vmatprep.subr.bf16.mxu0 0
        %896 = vmatpush1.bf16.msra.mxu0 0
        %897 = vmatprep.mubr.bf16.mxu0 0
        %898 = vmatmul.mubr.bf16.gmra.mrb[0].mxu0 %v860
        %v899 = vpop.f32.mrb[0].mxu0
        %v900 = vadd.f32 0.0, %v899
        %v901 = vpop.f32.mrb[0].mxu0
        %v902 = vpop.f32.mrb[0].mxu0
        %v903 = vpop.f32.mrb[0].mxu0
        %904 = vdwg.mxu0
        %v905 = vpack.c.bf16 %v900, %v900
        %v908 = vunpack.c.l.b16 %v677
        %v909 = vunpack.c.l.b16 %v678
        %v910 = vpack.c.b16 %v909, %v908
        %v913 = vsel %vm681, %v905, 0
        %915 = vmatprep.subr.bf16.mxu0 0
        %916 = vmatpush1.bf16.msra.mxu0 %v910
        %917 = vmatprep.subr.bf16.mxu0 0
        %918 = vmatpush1.bf16.msra.mxu0 0
        %919 = vmatprep.subr.bf16.mxu0 0
        %920 = vmatpush1.bf16.msra.mxu0 0
        %921 = vmatprep.subr.bf16.mxu0 0
        %922 = vmatpush1.bf16.msra.mxu0 0
        %923 = vmatprep.subr.bf16.mxu0 0
        %924 = vmatpush1.bf16.msra.mxu0 0
        %925 = vmatprep.subr.bf16.mxu0 0
        %926 = vmatpush1.bf16.msra.mxu0 0
        %927 = vmatprep.subr.bf16.mxu0 0
        %928 = vmatpush1.bf16.msra.mxu0 0
        %929 = vmatprep.subr.bf16.mxu0 0
        %930 = vmatpush1.bf16.msra.mxu0 0
        %931 = vmatprep.subr.bf16.mxu0 0
        %932 = vmatpush1.bf16.msra.mxu0 0
        %933 = vmatprep.subr.bf16.mxu0 0
        %934 = vmatpush1.bf16.msra.mxu0 0
        %935 = vmatprep.subr.bf16.mxu0 0
        %936 = vmatpush1.bf16.msra.mxu0 0
        %937 = vmatprep.subr.bf16.mxu0 0
        %938 = vmatpush1.bf16.msra.mxu0 0
        %939 = vmatprep.subr.bf16.mxu0 0
        %940 = vmatpush1.bf16.msra.mxu0 0
        %941 = vmatprep.subr.bf16.mxu0 0
        %942 = vmatpush1.bf16.msra.mxu0 0
        %943 = vmatprep.subr.bf16.mxu0 0
        %944 = vmatpush1.bf16.msra.mxu0 0
        %945 = vmatprep.subr.bf16.mxu0 0
        %946 = vmatpush1.bf16.msra.mxu0 0
        %947 = vmatprep.mubr.bf16.mxu0 0
        %948 = vmatmul.mubr.bf16.gmra.mrb[0].mxu0 %v913
        %v949 = vpop.f32.mrb[0].mxu0
        %v950 = vadd.f32 0.0, %v949
        %v951 = vpop.f32.mrb[0].mxu0
        %v952 = vpop.f32.mrb[0].mxu0
        %v953 = vpop.f32.mrb[0].mxu0
        %954 = vdwg.mxu0
        %v957 = vunpack.c.l.b16 %v675
        %v958 = vunpack.c.l.b16 %v676
        %v959 = vpack.c.b16 %v958, %v957
        %v962 = vsel %vm681, %v790, 0
        %964 = vmatprep.subr.bf16.mxu0 0
        %965 = vmatpush1.bf16.msra.mxu0 %v959
        %966 = vmatprep.subr.bf16.mxu0 0
        %967 = vmatpush1.bf16.msra.mxu0 0
        %968 = vmatprep.subr.bf16.mxu0 0
        %969 = vmatpush1.bf16.msra.mxu0 0
        %970 = vmatprep.subr.bf16.mxu0 0
        %971 = vmatpush1.bf16.msra.mxu0 0
        %972 = vmatprep.subr.bf16.mxu0 0
        %973 = vmatpush1.bf16.msra.mxu0 0
        %974 = vmatprep.subr.bf16.mxu0 0
        %975 = vmatpush1.bf16.msra.mxu0 0
        %976 = vmatprep.subr.bf16.mxu0 0
        %977 = vmatpush1.bf16.msra.mxu0 0
        %978 = vmatprep.subr.bf16.mxu0 0
        %979 = vmatpush1.bf16.msra.mxu0 0
        %980 = vmatprep.subr.bf16.mxu0 0
        %981 = vmatpush1.bf16.msra.mxu0 0
        %982 = vmatprep.subr.bf16.mxu0 0
        %983 = vmatpush1.bf16.msra.mxu0 0
        %984 = vmatprep.subr.bf16.mxu0 0
        %985 = vmatpush1.bf16.msra.mxu0 0
        %986 = vmatprep.subr.bf16.mxu0 0
        %987 = vmatpush1.bf16.msra.mxu0 0
        %988 = vmatprep.subr.bf16.mxu0 0
        %989 = vmatpush1.bf16.msra.mxu0 0
        %990 = vmatprep.subr.bf16.mxu0 0
        %991 = vmatpush1.bf16.msra.mxu0 0
        %992 = vmatprep.subr.bf16.mxu0 0
        %993 = vmatpush1.bf16.msra.mxu0 0
        %994 = vmatprep.subr.bf16.mxu0 0
        %995 = vmatpush1.bf16.msra.mxu0 0
        %996 = vmatprep.mubr.bf16.mxu0 0
        %997 = vmatmul.mubr.bf16.gmra.mrb[0].mxu0 %v962
        %v998 = vpop.f32.mrb[0].mxu0
        %v999 = vadd.f32 %v950, %v998
        %v1000 = vpop.f32.mrb[0].mxu0
        %v1001 = vpop.f32.mrb[0].mxu0
        %v1002 = vpop.f32.mrb[0].mxu0
        %1003 = vdwg.mxu0
        %v1004 = vld [vmem:[%s7] sm:$0x1]
        %v1006 = vlaneseq
        %v1007 = vshrl.u32 %v1006, 7
        %v1008 = vsub.s32 0, %v1007
        %v1009 = vrot.slane %v1004, %v1008
        %v1011 = vadd.f32 %v999, %v1009
        %v1012 = vadd.f32 %v1011, %v491
        %v1013 = vsel %vm511, %v1012, 0.0
        %1014 = vadd.xlane.f32.xlu0 %v1013
        %v1015 = vpop.xlane.xlu0 %1014
        %v1016 = vrcp.pop 32.0
        %v1017 = vmul.f32 %v1015, %v1016
        %v1018 = vsub.f32 %v1012, %v1017
        %v1019 = vmul.f32 %v1018, %v1018
        %v1020 = vsel %vm511, %v1019, 0.0
        %1021 = vadd.xlane.f32.xlu0 %v1020
        %v1022 = vpop.xlane.xlu0 %1021
        %v1023 = vmul.f32 %v1022, %v1016
        %v1024 = vadd.f32 %v1023, 1e-05
        %v1025 = vrsqrt.pop %v1024
        %v1026 = vmul.f32 %v1018, %v1025
        %v1027 = vld [vmem:[%s8] sm:$0x1]
        %v1029 = vlaneseq
        %v1030 = vshrl.u32 %v1029, 7
        %v1031 = vsub.s32 0, %v1030
        %v1032 = vrot.slane %v1027, %v1031
        %v1034 = vmul.f32 %v1026, %v1032
        %v1035 = vld [vmem:[%s9] sm:$0x1]
        %v1037 = vlaneseq
        %v1038 = vshrl.u32 %v1037, 7
        %v1039 = vsub.s32 0, %v1038
        %v1040 = vrot.slane %v1035, %v1039
        %v1042 = vadd.f32 %v1034, %v1040
        %1043 = vst.msk [vmem:[%s489] sm:$0xff] %vm511, %v1042
        %s1044 = sand.u32 %s265, 1
        %s1045 = scalar_lea.sflag [#allocation4], %s1044
        %s1046 = sand.u32 %s265, 1
        %s1047 = smul.addr %s1046, 8
        %s1048 = scalar_lea.vmem [#allocation13], %s1047
        // Predicated region
        $region85: #{tpu_custom_call.1} parent=59 // pred_check
          %p1049 = pneg %p275
        $region86: #{tpu_custom_call.1} parent=59 // pred_check_branch
          %1051 = sbr.rel (%p1049) target = $region88
        $region87: #{tpu_custom_call.1} parent=59 // pred_region
          %s1053 = ssub.s32 128, 128
          %1054 = vsyncadd %s1045, %s1053
          %s1055 = smul.addr %s32, 128
          %s1056 = scalar_lea.hbm %s10, %s1055
          %s1058 = sshll.u32 %s1048, 4
          %s1059 = int_to_ptr.vmem [resolvable:$true] %s1058
          %1061 = dma.vmem_to_hbm [thread:$0]  %s1059, 128, %s1056, %s1045
        $region88: #{tpu_custom_call.1} parent=59 // pred_fallthru
          _
      $region60: #{tpu_custom_call.1} parent=5 // pred_fallthru
        _
      %p1062 = scmp.le.s32.totalorder 2, %s27
      // Predicated region
      $region89: #{tpu_custom_call.1} parent=5 // pred_check
        %p1063 = pneg %p1062
      $region90: #{tpu_custom_call.1} parent=5 // pred_check_branch
        %1065 = sbr.rel (%p1063) target = $region92
      $region91: #{tpu_custom_call.1} parent=5 // pred_region
        %s1066 = ssub.s32 %s27, 2
        // Predicated region
        $region93: #{tpu_custom_call.1} parent=91 // pred_check
          %p1067 = pneg %p281
        $region94: #{tpu_custom_call.1} parent=91 // pred_check_branch
          %1069 = sbr.rel (%p1067) target = $region96
        $region95: #{tpu_custom_call.1} parent=91 // pred_region
          %s1070 = sand.u32 %s266, 1
          %s1071 = scalar_lea.sflag [#allocation4], %s1070
          %s1072 = sand.u32 %s266, 1
          %s1073 = smul.addr %s1072, 8
          %s1074 = scalar_lea.vmem [#allocation13], %s1073
          %1075 = dma.done %s1071, 128
        $region96: #{tpu_custom_call.1} parent=91 // pred_fallthru
          _
      $region92: #{tpu_custom_call.1} parent=5 // pred_fallthru
        _
    $region6: #{tpu_custom_call.1} parent=1 // loop_footer
      %s31 = sadd.s32 1, %s27
    $region7: #{tpu_custom_call.1} parent=1 // loop_footer_branch
      %26 = sbr.rel target = $region3
    $region8: #{tpu_custom_call.1} parent=1 // loop_exit
      _
    %1076 = vsyncpa [#allocation3], 1
    %s1077 = scalar_lea.sflag [#allocation3], 1
    %1078 = vsyncpa %s1077, 1
    %1079 = vsyncpa [#allocation6], 1
    %s1080 = scalar_lea.sflag [#allocation6], 1
    %1081 = vsyncpa %s1080, 1
    %1082 = vsyncpa [#allocation9], 1
    %1083 = vsyncpa [#allocation12], 1
    %1084 = vsyncpa [#allocation4], 1
    %s1085 = scalar_lea.sflag [#allocation4], 1
    %1086 = vsyncpa %s1085, 1

</llo_original>
